<compile_context>
chip_gen: v6e
topology: v6e:2x2x1
jax: 0.10.0
libtpu: 0.0.40
codegen_flags: <defaults>
</compile_context>

<pallas_src>
import functools

import jax
import jax.numpy as jnp
from jax.experimental import pallas as pl
from jax.experimental.pallas import tpu as pltpu


# ---------------------------------------------------------------------------
# Tiling policy
# ---------------------------------------------------------------------------
# Lanes of batch per grid step (class axis sits on sublanes in the (C, B)
# layout).  65536 lanes * 7 classes * 4 B = 1.75 MiB per y_pred buffer; with
# double-buffered y_pred + labels the pipeline footprint is ~4.5 MiB, well
# inside the 32 MiB scoped-VMEM limit (and v7x's 64 MiB physical VMEM).
_MAX_TILE_B = 65536
# Once the batch is big enough to matter, always emit >= 2 parallel tiles so
# the grid axis can be split across v7x's two TensorCores.
_MIN_SPLIT_B = 2048
# Below this the pallas_call fixed cost dominates; use the fused-jnp fallback.
_MIN_PALLAS_B = 1024


def _round_up(x: int, m: int) -> int:
    return ((x + m - 1) // m) * m


def _focal_loss_kernel(yp_ref, lbl_ref, alpha_ref, out_ref, *,
                       gamma: float, epsilon: float):
    """One batch tile of the focal loss, reduced to a per-tile partial sum.

    Layout: class axis on sublanes (C rows), batch axis on lanes (tile_b).
    """
    yp = yp_ref[...].astype(jnp.float32)        # (C, tile_b) softmax probs
    lbl = lbl_ref[...]                          # (1, tile_b) int32 labels
    a = alpha_ref[...].astype(jnp.float32)      # (C, 1) per-class alpha

    c, tile_b = yp.shape

    # Rebuild the one-hot mask in-kernel from integer labels (iota + compare
    # is free VPU work hidden under the input DMA; saves streaming a f32
    # one-hot tensor from HBM).  Padded lanes carry label -1 -> all-zero mask.
    cls = jax.lax.broadcasted_iota(jnp.int32, (c, tile_b), 0)
    mask = (cls == lbl).astype(jnp.float32)     # (C, tile_b)

    # Fused "gathers": y_true-weighted sublane sums over the class axis.
    probs = jnp.sum(yp * mask, axis=0, keepdims=True)       # (1, tile_b)
    alpha_sel = jnp.sum(a * mask, axis=0, keepdims=True)     # (1, tile_b)

    safe = jnp.clip(probs, epsilon, 1.0 - epsilon)
    one_minus = 1.0 - safe

    # Integer gamma (default 2.0): repeated VPU multiply instead of
    # jnp.power -> exp(gamma * log(x)) on the single EUP slot.
    g = float(gamma)
    if g == 0.0:
        fw_pow = jnp.ones_like(one_minus)
    elif g.is_integer() and 1.0 <= g <= 8.0:
        fw_pow = one_minus
        for _ in range(int(g) - 1):
            fw_pow = fw_pow * one_minus
    else:
        fw_pow = jnp.power(one_minus, g)

    # Per-sample focal loss; padded lanes have alpha_sel == 0 -> contribute 0.
    loss = alpha_sel * fw_pow * (-jnp.log(safe))              # (1, tile_b)

    # Per-tile partial sum (cross-lane XLU reduce, hidden under the DMA),
    # written lane-dense into lane 0 of a 128-wide output row.  Keeps the
    # grid axis fully 'parallel' (megacore-shardable).
    tile_sum = jnp.sum(loss)
    lane = jax.lax.broadcasted_iota(jnp.int32, (1, 128), 1)
    out_ref[...] = jnp.where(lane == 0, tile_sum, 0.0).astype(out_ref.dtype)


def _focal_loss_jnp(y_pred_bc, labels, alpha, gamma, epsilon, reduction):
    """Fused pure-jnp fallback for small batches (no pallas_call overhead)."""
    probs = jnp.take_along_axis(
        y_pred_bc.astype(jnp.float32), labels[:, None], axis=1)[:, 0]
    safe = jnp.clip(probs, epsilon, 1.0 - epsilon)
    a_sel = alpha.astype(jnp.float32)[labels]
    loss = a_sel * jnp.power(1.0 - safe, gamma) * (-jnp.log(safe))
    return jnp.mean(loss) if reduction == "mean" else jnp.sum(loss)


def focal_multiclass_log_loss(y_pred, y_true, alpha, *,
                              gamma: float = 2.0,
                              epsilon: float = 1e-7,
                              reduction: str = "mean",
                              class_major: bool = False,
                              force_pallas: bool = False):
    """JAX/Pallas equivalent of FocalMutiClassLogLoss.forward.

    y_pred: (B, C) softmax probabilities (any float dtype), or (C, B) when
            class_major=True (lets the producer skip the wrapper transpose).
    y_true: (B, C) one-hot labels, or (B,) integer class labels.
    alpha:  (C,) per-class alpha weights.
    Returns a scalar (f32): mean if reduction == 'mean' else sum (matches the
    PyTorch module, which treats every non-'mean' value as sum).
    """
    if class_major:
        C, B = y_pred.shape
    else:
        B, C = y_pred.shape
    if alpha.shape[0] != C:
        raise ValueError("alpha must have length equal to the number of classes")

    # Integer labels: derive from one-hot once in the wrapper if needed.
    if y_true.ndim == 2:
        labels = jnp.argmax(y_true, axis=1).astype(jnp.int32)     # (B,)
    else:
        labels = y_true.astype(jnp.int32)                          # (B,)

    # Small-batch fast path: XLA fusion beats the pallas_call fixed cost.
    if (not force_pallas) and B < _MIN_PALLAS_B:
        y_pred_bc = jnp.transpose(y_pred) if class_major else y_pred
        return _focal_loss_jnp(y_pred_bc, labels, alpha, gamma, epsilon, reduction)

    # Layout plumbing: batch on lanes, classes on sublanes.  When the producer
    # already emits (C, B) (class_major=True) this is a no-op; otherwise it is
    # one fused transpose(+pad) pass over y_pred only (y_true is labels now).
    yp_cm = y_pred if class_major else jnp.transpose(y_pred)      # (C, B)
    labels_row = labels.reshape(1, B)                              # (1, B)
    alpha_col = jnp.reshape(alpha, (C, 1))                         # (C, 1)

    # Tile selection: >=2 parallel tiles once B >= _MIN_SPLIT_B (v7x megacore),
    # tiles capped at _MAX_TILE_B, always a multiple of 128 lanes.
    if B < _MIN_SPLIT_B:
        num_tiles = 1
    else:
        num_tiles = max(2, pl.cdiv(B, _MAX_TILE_B))
    tile_b = _round_up(pl.cdiv(B, num_tiles), 128)
    padded_b = num_tiles * tile_b

    pad = padded_b - B
    if pad:
        # Zero-pad probs; pad labels with -1 (out-of-range class) so the
        # in-kernel mask is all-zero on padded lanes -> exact 0 contribution.
        yp_cm = jnp.pad(yp_cm, ((0, 0), (0, pad)))
        labels_row = jnp.pad(labels_row, ((0, 0), (0, pad)), constant_values=-1)

    kernel = functools.partial(_focal_loss_kernel,
                               gamma=float(gamma), epsilon=float(epsilon))

    partials = pl.pallas_call(
        kernel,
        out_shape=jax.ShapeDtypeStruct((1, num_tiles * 128), jnp.float32),
        grid=(num_tiles,),
        in_specs=[
            pl.BlockSpec((C, tile_b), lambda i: (0, i)),
            pl.BlockSpec((1, tile_b), lambda i: (0, i)),
            pl.BlockSpec((C, 1), lambda i: (0, 0)),
        ],
        out_specs=pl.BlockSpec((1, 128), lambda i: (0, i)),
        compiler_params=pltpu.CompilerParams(
            # Batch tiles are independent -> megacore-shardable on v7x.
            dimension_semantics=("parallel",),
            vmem_limit_bytes=32 * 1024 * 1024,
        ),
    )(yp_cm, labels_row, alpha_col)

    # Tiny finalize: sum num_tiles scalars (padded lanes of each row are 0).
    total = jnp.sum(partials)
    if reduction == "mean":
        return total / jnp.float32(B)
    return total


def _reference(y_pred, y_true, alpha, gamma, epsilon, reduction):
    probs = jnp.sum(y_pred * y_true, axis=1)
    safe = jnp.clip(probs, epsilon, 1.0 - epsilon)
    a = alpha[jnp.argmax(y_true, axis=1)]
    fw = a * jnp.power(1.0 - safe, gamma)
    loss = fw * -jnp.log(safe)
    return jnp.mean(loss) if reduction == "mean" else jnp.sum(loss)


if __name__ == "__main__":
    # Deterministic "config": 7 emotion classes, default gamma/reduction/eps.
    NUM_CLASSES = 7
    gamma = 2.0
    epsilon = 1e-7
    reduction = "mean"
    # losses_focal_alpha: deterministic per-class alphas (list of len C).
    alpha = jnp.linspace(0.1, 0.7, NUM_CLASSES).astype(jnp.float32)

    key = jax.random.PRNGKey(0)
    k1, k2, k3, k4 = jax.random.split(key, 4)

    # --- Check 1: module-parity interface, small batch (forced Pallas path).
    B1 = 8
    logits1 = jax.random.normal(k1, (B1, NUM_CLASSES), dtype=jnp.float32)
    y_pred1 = jax.nn.softmax(logits1, axis=1)                     # (B, C) probs
    labels1 = jax.random.randint(k2, (B1,), 0, NUM_CLASSES)
    y_true1 = jax.nn.one_hot(labels1, NUM_CLASSES, dtype=jnp.float32)

    out1 = focal_multiclass_log_loss(
        y_pred1, y_true1, alpha, gamma=gamma, epsilon=epsilon,
        reduction=reduction, force_pallas=True)
    out1 = jax.block_until_ready(out1)
    ref1 = _reference(y_pred1, y_true1, alpha, gamma, epsilon, reduction)
    assert jnp.allclose(out1, ref1, rtol=1e-5, atol=1e-6), (out1, ref1)

    # --- Check 2: multi-tile ragged batch (>= 2 parallel tiles + padding),
    # integer labels + class-major y_pred (no wrapper transpose).
    B2 = 4099
    logits2 = jax.random.normal(k3, (B2, NUM_CLASSES), dtype=jnp.float32)
    y_pred2 = jax.nn.softmax(logits2, axis=1)
    labels2 = jax.random.randint(k4, (B2,), 0, NUM_CLASSES).astype(jnp.int32)

    out2 = focal_multiclass_log_loss(
        jnp.transpose(y_pred2), labels2, alpha, gamma=gamma, epsilon=epsilon,
        reduction=reduction, class_major=True, force_pallas=True)
    out2 = jax.block_until_ready(out2)
    y_true2 = jax.nn.one_hot(labels2, NUM_CLASSES, dtype=jnp.float32)
    ref2 = _reference(y_pred2, y_true2, alpha, gamma, epsilon, reduction)
    assert jnp.allclose(out2, ref2, rtol=1e-5, atol=1e-6), (out2, ref2)

    print("KERNEL_OK")
</pallas_src>

<mosaic_0001>
module attributes {stable_mosaic.version = 11 : i64} {
  func.func @_focal_loss_kernel(%arg0: i32, %arg1: memref<7x128xf32, #tpu.memory_space<vmem>>, %arg2: memref<1x128xi32, #tpu.memory_space<vmem>>, %arg3: memref<7x1xf32, #tpu.memory_space<vmem>>, %arg4: memref<1x128xf32, #tpu.memory_space<vmem>>) attributes {dimension_semantics = [#tpu.dimension_semantics<parallel>], iteration_bounds = array<i64: 1>, scalar_prefetch = 0 : i64, scratch_operands = 0 : i64, tpu.core_type = #tpu.core_type<tc>, window_params = [{transform_indices = @transform_0, window_bounds = array<i64: 7, 128>}, {transform_indices = @transform_1, window_bounds = array<i64: 1, 128>}, {pipeline_mode = #tpu.pipeline_mode<synchronous>, transform_indices = @transform_2, window_bounds = array<i64: 7, 1>}, {transform_indices = @transform_3, window_bounds = array<i64: 1, 128>}]} {
    %c0 = arith.constant 0 : index
    %c0_0 = arith.constant 0 : index
    %0 = vector.load %arg1[%c0, %c0_0] : memref<7x128xf32, #tpu.memory_space<vmem>>, vector<7x128xf32>
    %c0_1 = arith.constant 0 : index
    %c0_2 = arith.constant 0 : index
    %1 = vector.load %arg2[%c0_1, %c0_2] : memref<1x128xi32, #tpu.memory_space<vmem>>, vector<1x128xi32>
    %c0_3 = arith.constant 0 : index
    %c0_4 = arith.constant 0 : index
    %2 = vector.load %arg3[%c0_3, %c0_4] : memref<7x1xf32, #tpu.memory_space<vmem>>, vector<7x1xf32>
    %3 = tpu.iota {dimensions = array<i32: 0>} : vector<7x128xi32>
    %4 = vector.broadcast %1 : vector<1x128xi32> to vector<7x128xi32>
    %5 = arith.cmpi eq, %3, %4 : vector<7x128xi32>
    %6 = arith.extui %5 : vector<7x128xi1> to vector<7x128xi32>
    %7 = arith.sitofp %6 : vector<7x128xi32> to vector<7x128xf32>
    %8 = arith.mulf %0, %7 : vector<7x128xf32>
    %cst = arith.constant dense<0.000000e+00> : vector<128xf32>
    %9 = vector.multi_reduction <add>, %8, %cst [0] : vector<7x128xf32> to vector<128xf32>
    %10 = vector.shape_cast %9 : vector<128xf32> to vector<1x128xf32>
    %11 = vector.broadcast %2 : vector<7x1xf32> to vector<7x128xf32>
    %12 = arith.mulf %11, %7 : vector<7x128xf32>
    %cst_5 = arith.constant dense<0.000000e+00> : vector<128xf32>
    %13 = vector.multi_reduction <add>, %12, %cst_5 [0] : vector<7x128xf32> to vector<128xf32>
    %14 = vector.shape_cast %13 : vector<128xf32> to vector<1x128xf32>
    %cst_6 = arith.constant 1.000000e-07 : f32
    %cst_7 = arith.constant 0.99999988 : f32
    %15 = vector.broadcast %cst_6 : f32 to vector<1x128xf32>
    %16 = arith.maximumf %15, %10 : vector<1x128xf32>
    %17 = vector.broadcast %cst_7 : f32 to vector<1x128xf32>
    %18 = arith.minimumf %17, %16 : vector<1x128xf32>
    %cst_8 = arith.constant 1.000000e+00 : f32
    %19 = vector.broadcast %cst_8 : f32 to vector<1x128xf32>
    %20 = arith.subf %19, %18 : vector<1x128xf32>
    %21 = arith.mulf %20, %20 : vector<1x128xf32>
    %22 = arith.mulf %14, %21 : vector<1x128xf32>
    %23 = math.log %18 : vector<1x128xf32>
    %cst_9 = arith.constant 0.000000e+00 : f32
    %24 = vector.broadcast %cst_9 : f32 to vector<1x128xf32>
    %25 = arith.subf %24, %23 : vector<1x128xf32>
    %26 = arith.mulf %22, %25 : vector<1x128xf32>
    %27 = vector.shape_cast %26 : vector<1x128xf32> to vector<1x1x128xf32>
    %cst_10 = arith.constant dense<0.000000e+00> : vector<1xf32>
    %28 = vector.multi_reduction <add>, %27, %cst_10 [1, 2] : vector<1x1x128xf32> to vector<1xf32>
    %29 = vector.shape_cast %28 : vector<1xf32> to vector<1x1x1xf32>
    %30 = vector.extract %29[0, 0, 0] : f32 from vector<1x1x1xf32>
    %31 = tpu.iota {dimensions = array<i32: 1>} : vector<1x128xi32>
    %c0_i32 = arith.constant 0 : i32
    %32 = vector.broadcast %c0_i32 : i32 to vector<1x128xi32>
    %33 = arith.cmpi eq, %31, %32 : vector<1x128xi32>
    %cst_11 = arith.constant 0.000000e+00 : f32
    %34 = vector.broadcast %30 : f32 to vector<1x128xf32>
    %35 = vector.broadcast %cst_11 : f32 to vector<1x128xf32>
    %36 = arith.select %33, %34, %35 : vector<1x128xi1>, vector<1x128xf32>
    %c0_12 = arith.constant 0 : index
    %c0_13 = arith.constant 0 : index
    %37 = vector.load %arg4[%c0_12, %c0_13] : memref<1x128xf32, #tpu.memory_space<vmem>>, vector<1x128xf32>
    tpu.vector_store %arg4[%c0_12, %c0_13], %36 {strides = array<i32>} : memref<1x128xf32, #tpu.memory_space<vmem>>, vector<1x128xf32>,
    return
  }
  func.func @transform_0(%arg0: i32) -> (i32, i32) {
    %c0_i32 = arith.constant 0 : i32
    %c0_i32_0 = arith.constant 0 : i32
    return %c0_i32, %arg0 : i32, i32
  }
  func.func @transform_1(%arg0: i32) -> (i32, i32) {
    %c0_i32 = arith.constant 0 : i32
    %c0_i32_0 = arith.constant 0 : i32
    return %c0_i32, %arg0 : i32, i32
  }
  func.func @transform_2(%arg0: i32) -> (i32, i32) {
    %c0_i32 = arith.constant 0 : i32
    %c0_i32_0 = arith.constant 0 : i32
    %c0_i32_1 = arith.constant 0 : i32
    return %c0_i32, %c0_i32_0 : i32, i32
  }
  func.func @transform_3(%arg0: i32) -> (i32, i32) {
    %c0_i32 = arith.constant 0 : i32
    %c0_i32_0 = arith.constant 0 : i32
    return %c0_i32, %arg0 : i32, i32
  }
}

</mosaic_0001>

<llo_original>
// kernel: tpu_custom_call.1
$region0: #{tpu_custom_call.1}
  #allocation0 [shape = 'u32[]', space=smem, size = 0x4, offset = 0x4, fixed_abs, tag = 'smem constant byte address 0x4 - core index']
  #allocation1 [shape = 'u32[144,128]{1,0:T(1,128)}', space=vmem, size = 0x12000, scoped, tag = 'internal scratch']
  %s0 = inlined_call_operand.vmem [shape: f32[7,128], index: 0, kind: input, shape index: {}]
  %s1 = inlined_call_operand.vmem [shape: s32[1,128], index: 1, kind: input, shape index: {}]
  %s2 = inlined_call_operand.vmem [shape: f32[7,1], index: 2, kind: input, shape index: {}]
  %s3 = inlined_call_operand.hbm [shape: f32[1,128], index: 3, kind: output, shape index: {}]
  %s4 = sld [smem:[#allocation0]]
  $region22: #{tpu_custom_call.1} parent=0
    _
  %s6 = ssub.s32 1, %s4
  %s7 = scalar_select 0, %s6, %s4
  $region1: #{tpu_custom_call.1} parent=0
    #allocation2 [shape = 'u8[512]{0}', space=vmem, size = 0x400, scoped, tag = 'output window, operand 0, single buffered']
    #allocation3 [shape = 's32[1]{0}', space=sflag, size = 0x4, scoped, tag = 'scoped memory for tpu_custom_call.1']
    %8 = vsyncpa [#allocation3], 0
    // Predicated region
    $region2: #{tpu_custom_call.1} parent=1 // pred_check
      _
    $region3: #{tpu_custom_call.1} parent=1 // pred_check_branch
      %10 = sbr.rel (0) target = $region5
    $region4: #{tpu_custom_call.1} parent=1 // pred_region
      _
    $region5: #{tpu_custom_call.1} parent=1 // pred_fallthru
      _
    // Predicated region
    $region6: #{tpu_custom_call.1} parent=1 // pred_check
      _
    $region7: #{tpu_custom_call.1} parent=1 // pred_check_branch
      %12 = sbr.rel (0) target = $region9
    $region8: #{tpu_custom_call.1} parent=1 // pred_region
      _
    $region9: #{tpu_custom_call.1} parent=1 // pred_fallthru
      _
    // Predicated region
    $region10: #{tpu_custom_call.1} parent=1 // pred_check
      _
    $region11: #{tpu_custom_call.1} parent=1 // pred_check_branch
      %14 = sbr.rel (0) target = $region13
    $region12: #{tpu_custom_call.1} parent=1 // pred_region
      _
    $region13: #{tpu_custom_call.1} parent=1 // pred_fallthru
      _
    %v15 = vld [vmem:[%s0] sm:$0x7f]
    %v16 = vld [vmem:[%s1] sm:$0x1]
    %v17 = vld [vmem:[%s2] sm:$0x7f]
    %v18 = vlaneseq
    %v19 = vshrl.u32 %v18, 7
    %v20 = vlaneseq
    %v21 = vshrl.u32 %v20, 7
    %v22 = vsub.s32 0, %v21
    %v23 = vrot.slane %v16, %v22
    %vm24 = vcmp.eq.s32.totalorder %v19, %v23
    %v25 = vsel %vm24, 1, 0
    %v26 = vcvt.s32.f32 %v25
    %v27 = vmul.f32 %v15, %v26
    %vm28 = vcmask 1046528
    %v29 = vsel %vm28, %v27, 0.0
    %v30 = vrot.slane %v29, 4
    %v31 = vadd.f32 %v29, %v30
    %v32 = vrot.slane %v31, 2
    %v33 = vadd.f32 %v31, %v32
    %v34 = vrot.slane %v33, 1
    %v35 = vadd.f32 %v33, %v34
    %37 = vset.pattern.permute.xlu0 0
    %38 = vperm.xlu0 %37, %v17
    %v39 = vpop.permute.xlu0 %38
    %v41 = vmul.f32 %v39, %v26
    %v42 = vsel %vm28, %v41, 0.0
    %v43 = vrot.slane %v42, 4
    %v44 = vadd.f32 %v42, %v43
    %v45 = vrot.slane %v44, 2
    %v46 = vadd.f32 %v44, %v45
    %v47 = vrot.slane %v46, 1
    %v48 = vadd.f32 %v46, %v47
    %v49 = vmax.f32 %v35, 1e-07
    %v50 = vmin.f32 %v49, 0.9999999
    %v51 = vsub.f32 1.0, %v50
    %v52 = vmul.f32 %v51, %v51
    %v53 = vmul.f32 %v48, %v52
    %v54 = vlog2.pop %v50
    %v55 = vmul.f32 %v54, 0.6931472
    %v56 = vsub.f32 0.0, %v55
    %v57 = vmul.f32 %v53, %v56
    %vm58 = vcmask 1040384
    %v59 = vsel %vm58, %v57, 0.0
    %60 = vadd.xlane.f32.xlu0 %v59
    %v61 = vpop.xlane.xlu0 %60
    %v62 = vrot.slane %v61, 4
    %v63 = vadd.f32 %v61, %v62
    %v64 = vrot.slane %v63, 2
    %v65 = vadd.f32 %v63, %v64
    %v66 = vrot.slane %v65, 1
    %v67 = vadd.f32 %v65, %v66
    %s68 = vtos %v67
    %v69 = vlaneseq
    %v70 = vand.u32 %v69, 127
    %vm71 = vcmp.eq.s32.totalorder %v70, 0
    %v72 = vstv %s68
    %v73 = vsel %vm71, %v72, 0.0
    %74 = vst [vmem:[#allocation2] sm:$0x1] %v73
    // Predicated region
    $region14: #{tpu_custom_call.1} parent=1 // pred_check
      _
    $region15: #{tpu_custom_call.1} parent=1 // pred_check_branch
      %76 = sbr.rel (0) target = $region17
    $region16: #{tpu_custom_call.1} parent=1 // pred_region
      %s78 = ssub.s32 16, 16
      %79 = vsyncadd [#allocation3], %s78
      %s81 = sshll.u32 [#allocation2], 4
      %s82 = int_to_ptr.vmem [resolvable:$true] %s81
      %84 = dma.vmem_to_hbm [thread:$0]  %s82, 16, %s3, [#allocation3]
    $region17: #{tpu_custom_call.1} parent=1 // pred_fallthru
      _
    // Predicated region
    $region18: #{tpu_custom_call.1} parent=1 // pred_check
      _
    $region19: #{tpu_custom_call.1} parent=1 // pred_check_branch
      %86 = sbr.rel (0) target = $region21
    $region20: #{tpu_custom_call.1} parent=1 // pred_region
      %87 = dma.done [#allocation3], 16
    $region21: #{tpu_custom_call.1} parent=1 // pred_fallthru
      _
    %88 = vsyncpa [#allocation3], 1

</llo_original>
